<compile_context>
chip_gen: v7x
topology: tpu7x:2x2x1
jax: 0.10.0
libtpu: 0.0.40
codegen_flags: <defaults>
</compile_context>

<pallas_src>
import numpy as np
import jax
import jax.numpy as jnp
from jax.experimental import pallas as pl
from jax.experimental.pallas import tpu as pltpu
from scipy.optimize import linear_sum_assignment


def _round_up(x, m):
    return ((x + m - 1) // m) * m


def _choose_block_e(n_events):
    """Largest event block in {128..8192} keeping padding waste < ~12.5%."""
    e128 = _round_up(max(int(n_events), 1), 128)
    block = 128
    for cand in (256, 512, 1024, 2048, 4096, 8192):
        e_pad = _round_up(e128, cand)
        if e_pad - e128 <= e128 // 8:
            block = cand
    return block, _round_up(e128, block)


def _event_axis_semantics(num_blocks):
    """CORE_PARALLEL on v7x (2 TCs) when meaningful; 'parallel' otherwise."""
    core_parallel = getattr(pltpu, "CORE_PARALLEL", None)
    try:
        kind = jax.devices()[0].device_kind.lower()
    except Exception:  # pragma: no cover - defensive
        kind = ""
    if core_parallel is not None and num_blocks >= 2 and "v7" in kind:
        return (core_parallel,)
    return ("parallel",)


# --------------------------------------------------------------------------
# Hot path: pairwise summed-MSE cost, event-in-lanes layout.
#   pred_t, tgt_t : (D, K, E_pad)   ->   cost_t : (K_pred, K_tgt, E_pad)
#   cost[i, j, e] = sum_d (pred[d, i, e] - tgt[d, j, e])^2
# --------------------------------------------------------------------------
def _pair_cost_kernel(pred_ref, tgt_ref, cost_ref):
    D = pred_ref.shape[0]
    acc = None
    # D=4 static unroll: each d-slice is a leading-axis index (zero cost) and a
    # fully-populated (K=8 sublane, TE lane) tile; no (K,K,D,TE) intermediate,
    # no cross-sublane reduction — pure VPU broadcast/sub/mul/add.
    for d in range(D):
        pd = pred_ref[d].astype(jnp.float32)        # (K, TE)
        td = tgt_ref[d].astype(jnp.float32)         # (K, TE)
        diff = pd[:, None, :] - td[None, :, :]      # (K_pred, K_tgt, TE)
        sq = diff * diff
        acc = sq if acc is None else acc + sq
    cost_ref[...] = acc


def pairwise_mse_cost(pred_t, tgt_t, *, block_e):
    D, K, E_pad = pred_t.shape
    num_blocks = E_pad // block_e
    return pl.pallas_call(
        _pair_cost_kernel,
        out_shape=jax.ShapeDtypeStruct((K, K, E_pad), jnp.float32),
        grid_spec=pltpu.PrefetchScalarGridSpec(
            num_scalar_prefetch=0,
            grid=(num_blocks,),
            in_specs=[pl.BlockSpec((D, K, block_e), lambda b: (0, 0, b)),
                      pl.BlockSpec((D, K, block_e), lambda b: (0, 0, b))],
            out_specs=pl.BlockSpec((K, K, block_e), lambda b: (0, 0, b)),
        ),
        compiler_params=pltpu.CompilerParams(
            dimension_semantics=_event_axis_semantics(num_blocks),
            vmem_limit_bytes=32 * 1024 * 1024),
    )(pred_t, tgt_t)


# --------------------------------------------------------------------------
# Full forward (equivalent of Set2SetLoss.forward on a batched complete
# bipartite graph with E events, each with K predicted / K target objects).
# Returns (loss scalar on device, host (E, K, K) cost, host (E, K) col_idx).
# --------------------------------------------------------------------------
def set2set_loss(pred_properties, tgt_height, tgt_width, tgt_centers):
    E, K, D = pred_properties.shape

    # glue: torch.cat([h.unsqueeze(1), w.unsqueeze(1), centers], dim=1)
    tgt_properties = jnp.concatenate(
        [tgt_height[..., None], tgt_width[..., None], tgt_centers], axis=-1)

    block_e, E_pad = _choose_block_e(E)

    def to_lane_layout(x):                        # (E, K, D) -> (D, K, E_pad)
        x = jnp.transpose(x.astype(jnp.float32), (2, 1, 0))
        return jnp.pad(x, ((0, 0), (0, 0), (0, E_pad - E)))

    pred_t = to_lane_layout(pred_properties)
    tgt_t = to_lane_layout(tgt_properties)

    # Pallas hot path: per-edge summed MSE -> (K_pred, K_tgt, E_pad) costs.
    cost_t = pairwise_mse_cost(pred_t, tgt_t, block_e=block_e)

    # Host: Hungarian matching per event (block-diagonal graph decomposes) and
    # the matched-edge sum / mean over events (E*K adds — not worth a device
    # pass that would re-read the whole cost tensor).
    # TODO(synk): for large E, chunk the event axis and overlap host matching
    # of chunk i with the device cost kernel + D2H copy of chunk i+1, and
    # parallelize the scipy loop across host threads.
    cost_host = np.ascontiguousarray(
        np.asarray(jax.device_get(cost_t)).transpose(2, 0, 1)[:E])   # (E, K, K)
    col_idx = np.zeros((E, K), dtype=np.int32)
    matched_sum = np.zeros((E,), dtype=np.float64)
    for e in range(E):
        # +1e-8 matches the original (matching-only offset; assignment-invariant)
        rows, cols = linear_sum_assignment(cost_host[e] + 1e-8)
        col_idx[e, rows] = cols
        matched_sum[e] = cost_host[e][rows, cols].sum()

    # Mean over events (dgl.sum_nodes(...).mean()); upload a single scalar.
    loss = jnp.asarray(np.float32(matched_sum.mean()))
    return loss, cost_host, col_idx


if __name__ == "__main__":
    E, K, D = 2, 8, 4  # 2 events, 8 predicted / 8 target objects, 4 properties
    key = jax.random.PRNGKey(0)
    k1, k2, k3, k4 = jax.random.split(key, 4)
    pred_properties = jax.random.normal(k1, (E, K, D), dtype=jnp.float32)
    tgt_height = jax.random.normal(k2, (E, K), dtype=jnp.float32)
    tgt_width = jax.random.normal(k3, (E, K), dtype=jnp.float32)
    tgt_centers = jax.random.normal(k4, (E, K, 2), dtype=jnp.float32)

    loss, cost, col_idx = set2set_loss(
        pred_properties, tgt_height, tgt_width, tgt_centers)
    loss = jax.block_until_ready(loss)

    # lightweight pure-numpy reference check
    tp = np.concatenate([np.asarray(tgt_height)[..., None],
                         np.asarray(tgt_width)[..., None],
                         np.asarray(tgt_centers)], axis=-1)
    pp = np.asarray(pred_properties)
    ref_cost = np.sum((pp[:, :, None, :] - tp[:, None, :, :]) ** 2, axis=-1)
    ref_loss = 0.0
    for e in range(E):
        r, c = linear_sum_assignment(ref_cost[e] + 1e-8)
        ref_loss += ref_cost[e][r, c].sum()
    ref_loss /= E

    assert np.allclose(np.asarray(cost), ref_cost, rtol=1e-4, atol=1e-5)
    assert np.allclose(float(loss), ref_loss, rtol=1e-4, atol=1e-5)
    print("KERNEL_OK")
</pallas_src>

<mosaic_0001>
module attributes {stable_mosaic.version = 11 : i64} {
  func.func @_pair_cost_kernel(%arg0: i32, %arg1: memref<4x8x128xf32, #tpu.memory_space<vmem>>, %arg2: memref<4x8x128xf32, #tpu.memory_space<vmem>>, %arg3: memref<8x8x128xf32, #tpu.memory_space<vmem>>) attributes {dimension_semantics = [#tpu.dimension_semantics<parallel>], iteration_bounds = array<i64: 1>, scalar_prefetch = 0 : i64, scratch_operands = 0 : i64, tpu.core_type = #tpu.core_type<tc>, window_params = [{transform_indices = @transform_0, window_bounds = array<i64: 4, 8, 128>}, {transform_indices = @transform_1, window_bounds = array<i64: 4, 8, 128>}, {transform_indices = @transform_2, window_bounds = array<i64: 8, 8, 128>}]} {
    %c0 = arith.constant 0 : index
    %c0_0 = arith.constant 0 : index
    %c0_1 = arith.constant 0 : index
    %0 = vector.load %arg1[%c0, %c0_0, %c0_1] : memref<4x8x128xf32, #tpu.memory_space<vmem>>, vector<1x8x128xf32>
    %1 = vector.shape_cast %0 : vector<1x8x128xf32> to vector<8x128xf32>
    %c0_2 = arith.constant 0 : index
    %c0_3 = arith.constant 0 : index
    %c0_4 = arith.constant 0 : index
    %2 = vector.load %arg2[%c0_2, %c0_3, %c0_4] : memref<4x8x128xf32, #tpu.memory_space<vmem>>, vector<1x8x128xf32>
    %3 = vector.shape_cast %2 : vector<1x8x128xf32> to vector<8x128xf32>
    %4 = vector.shape_cast %1 : vector<8x128xf32> to vector<8x1x128xf32>
    %5 = vector.shape_cast %3 : vector<8x128xf32> to vector<1x8x128xf32>
    %6 = vector.broadcast %4 : vector<8x1x128xf32> to vector<8x8x128xf32>
    %7 = vector.broadcast %5 : vector<1x8x128xf32> to vector<8x8x128xf32>
    %8 = arith.subf %6, %7 : vector<8x8x128xf32>
    %9 = arith.mulf %8, %8 : vector<8x8x128xf32>
    %c1 = arith.constant 1 : index
    %c0_5 = arith.constant 0 : index
    %c0_6 = arith.constant 0 : index
    %10 = vector.load %arg1[%c1, %c0_5, %c0_6] : memref<4x8x128xf32, #tpu.memory_space<vmem>>, vector<1x8x128xf32>
    %11 = vector.shape_cast %10 : vector<1x8x128xf32> to vector<8x128xf32>
    %c1_7 = arith.constant 1 : index
    %c0_8 = arith.constant 0 : index
    %c0_9 = arith.constant 0 : index
    %12 = vector.load %arg2[%c1_7, %c0_8, %c0_9] : memref<4x8x128xf32, #tpu.memory_space<vmem>>, vector<1x8x128xf32>
    %13 = vector.shape_cast %12 : vector<1x8x128xf32> to vector<8x128xf32>
    %14 = vector.shape_cast %11 : vector<8x128xf32> to vector<8x1x128xf32>
    %15 = vector.shape_cast %13 : vector<8x128xf32> to vector<1x8x128xf32>
    %16 = vector.broadcast %14 : vector<8x1x128xf32> to vector<8x8x128xf32>
    %17 = vector.broadcast %15 : vector<1x8x128xf32> to vector<8x8x128xf32>
    %18 = arith.subf %16, %17 : vector<8x8x128xf32>
    %19 = arith.mulf %18, %18 : vector<8x8x128xf32>
    %20 = arith.addf %9, %19 : vector<8x8x128xf32>
    %c2 = arith.constant 2 : index
    %c0_10 = arith.constant 0 : index
    %c0_11 = arith.constant 0 : index
    %21 = vector.load %arg1[%c2, %c0_10, %c0_11] : memref<4x8x128xf32, #tpu.memory_space<vmem>>, vector<1x8x128xf32>
    %22 = vector.shape_cast %21 : vector<1x8x128xf32> to vector<8x128xf32>
    %c2_12 = arith.constant 2 : index
    %c0_13 = arith.constant 0 : index
    %c0_14 = arith.constant 0 : index
    %23 = vector.load %arg2[%c2_12, %c0_13, %c0_14] : memref<4x8x128xf32, #tpu.memory_space<vmem>>, vector<1x8x128xf32>
    %24 = vector.shape_cast %23 : vector<1x8x128xf32> to vector<8x128xf32>
    %25 = vector.shape_cast %22 : vector<8x128xf32> to vector<8x1x128xf32>
    %26 = vector.shape_cast %24 : vector<8x128xf32> to vector<1x8x128xf32>
    %27 = vector.broadcast %25 : vector<8x1x128xf32> to vector<8x8x128xf32>
    %28 = vector.broadcast %26 : vector<1x8x128xf32> to vector<8x8x128xf32>
    %29 = arith.subf %27, %28 : vector<8x8x128xf32>
    %30 = arith.mulf %29, %29 : vector<8x8x128xf32>
    %31 = arith.addf %20, %30 : vector<8x8x128xf32>
    %c3 = arith.constant 3 : index
    %c0_15 = arith.constant 0 : index
    %c0_16 = arith.constant 0 : index
    %32 = vector.load %arg1[%c3, %c0_15, %c0_16] : memref<4x8x128xf32, #tpu.memory_space<vmem>>, vector<1x8x128xf32>
    %33 = vector.shape_cast %32 : vector<1x8x128xf32> to vector<8x128xf32>
    %c3_17 = arith.constant 3 : index
    %c0_18 = arith.constant 0 : index
    %c0_19 = arith.constant 0 : index
    %34 = vector.load %arg2[%c3_17, %c0_18, %c0_19] : memref<4x8x128xf32, #tpu.memory_space<vmem>>, vector<1x8x128xf32>
    %35 = vector.shape_cast %34 : vector<1x8x128xf32> to vector<8x128xf32>
    %36 = vector.shape_cast %33 : vector<8x128xf32> to vector<8x1x128xf32>
    %37 = vector.shape_cast %35 : vector<8x128xf32> to vector<1x8x128xf32>
    %38 = vector.broadcast %36 : vector<8x1x128xf32> to vector<8x8x128xf32>
    %39 = vector.broadcast %37 : vector<1x8x128xf32> to vector<8x8x128xf32>
    %40 = arith.subf %38, %39 : vector<8x8x128xf32>
    %41 = arith.mulf %40, %40 : vector<8x8x128xf32>
    %42 = arith.addf %31, %41 : vector<8x8x128xf32>
    %c0_20 = arith.constant 0 : index
    %c0_21 = arith.constant 0 : index
    %c0_22 = arith.constant 0 : index
    %43 = vector.load %arg3[%c0_20, %c0_21, %c0_22] : memref<8x8x128xf32, #tpu.memory_space<vmem>>, vector<8x8x128xf32>
    tpu.vector_store %arg3[%c0_20, %c0_21, %c0_22], %42 {strides = array<i32>} : memref<8x8x128xf32, #tpu.memory_space<vmem>>, vector<8x8x128xf32>,
    return
  }
  func.func @transform_0(%arg0: i32) -> (i32, i32, i32) {
    %c0_i32 = arith.constant 0 : i32
    %c0_i32_0 = arith.constant 0 : i32
    %c0_i32_1 = arith.constant 0 : i32
    return %c0_i32, %c0_i32_0, %arg0 : i32, i32, i32
  }
  func.func @transform_1(%arg0: i32) -> (i32, i32, i32) {
    %c0_i32 = arith.constant 0 : i32
    %c0_i32_0 = arith.constant 0 : i32
    %c0_i32_1 = arith.constant 0 : i32
    return %c0_i32, %c0_i32_0, %arg0 : i32, i32, i32
  }
  func.func @transform_2(%arg0: i32) -> (i32, i32, i32) {
    %c0_i32 = arith.constant 0 : i32
    %c0_i32_0 = arith.constant 0 : i32
    %c0_i32_1 = arith.constant 0 : i32
    return %c0_i32, %c0_i32_0, %arg0 : i32, i32, i32
  }
}

</mosaic_0001>

<llo_original>
// kernel: tpu_custom_call.1
$region0: #{tpu_custom_call.1}
  #allocation0 [shape = 'u32[]', space=smem, size = 0x4, offset = 0x4, fixed_abs, tag = 'smem constant byte address 0x4 - core index']
  #allocation1 [shape = 'u32[144,128]{1,0:T(1,128)}', space=vmem, size = 0x12000, scoped, tag = 'internal scratch']
  %s0 = inlined_call_operand.hbm [shape: f32[4,8,128], index: 0, kind: input, shape index: {}]
  %s1 = inlined_call_operand.hbm [shape: f32[4,8,128], index: 1, kind: input, shape index: {}]
  %s2 = inlined_call_operand.hbm [shape: f32[8,8,128], index: 2, kind: output, shape index: {}]
  %s3 = sld [smem:[#allocation0]]
  $region26: #{tpu_custom_call.1} parent=0
    _
  %s5 = ssub.s32 1, %s3
  %s6 = scalar_select 0, %s5, %s3
  $region1: #{tpu_custom_call.1} parent=0
    #allocation2 [shape = 'u8[16384]{0}', space=vmem, size = 0x4000, scoped, tag = 'input window, operand 0, single buffered']
    #allocation3 [shape = 's32[1]{0}', space=sflag, size = 0x4, scoped, tag = 'scoped memory for tpu_custom_call.1']
    #allocation4 [shape = 's32[1]{0}', space=sflag, size = 0x4, scoped, tag = 'scoped memory for tpu_custom_call.1']
    #allocation5 [shape = 'u8[16384]{0}', space=vmem, size = 0x4000, scoped, tag = 'input window, operand 1, single buffered']
    #allocation6 [shape = 's32[1]{0}', space=sflag, size = 0x4, scoped, tag = 'scoped memory for tpu_custom_call.1']
    #allocation7 [shape = 'u8[32768]{0}', space=vmem, size = 0x8000, scoped, tag = 'output window, operand 0, single buffered']
    %7 = vsyncpa [#allocation3], 0
    %8 = vsyncpa [#allocation6], 0
    %9 = vsyncpa [#allocation4], 0
    // Predicated region
    $region2: #{tpu_custom_call.1} parent=1 // pred_check
      _
    $region3: #{tpu_custom_call.1} parent=1 // pred_check_branch
      %11 = sbr.rel (0) target = $region5
    $region4: #{tpu_custom_call.1} parent=1 // pred_region
      %s13 = ssub.s32 512, 512
      %14 = vsyncadd [#allocation3], %s13
      %s15 = sshll.u32 [#allocation2], 4
      %s16 = int_to_ptr.vmem [resolvable:$true] %s15
      %21 = dma.hbm_to_vmem [thread:$0]  %s0, 512, %s16, [#allocation3], 128, 128, 8
    $region5: #{tpu_custom_call.1} parent=1 // pred_fallthru
      _
    // Predicated region
    $region6: #{tpu_custom_call.1} parent=1 // pred_check
      _
    $region7: #{tpu_custom_call.1} parent=1 // pred_check_branch
      %23 = sbr.rel (0) target = $region9
    $region8: #{tpu_custom_call.1} parent=1 // pred_region
      %s25 = ssub.s32 512, 512
      %26 = vsyncadd [#allocation6], %s25
      %s27 = sshll.u32 [#allocation5], 4
      %s28 = int_to_ptr.vmem [resolvable:$true] %s27
      %33 = dma.hbm_to_vmem [thread:$0]  %s1, 512, %s28, [#allocation6], 128, 128, 8
    $region9: #{tpu_custom_call.1} parent=1 // pred_fallthru
      _
    // Predicated region
    $region10: #{tpu_custom_call.1} parent=1 // pred_check
      _
    $region11: #{tpu_custom_call.1} parent=1 // pred_check_branch
      %35 = sbr.rel (0) target = $region13
    $region12: #{tpu_custom_call.1} parent=1 // pred_region
      %36 = dma.done [#allocation3], 512
    $region13: #{tpu_custom_call.1} parent=1 // pred_fallthru
      _
    // Predicated region
    $region14: #{tpu_custom_call.1} parent=1 // pred_check
      _
    $region15: #{tpu_custom_call.1} parent=1 // pred_check_branch
      %38 = sbr.rel (0) target = $region17
    $region16: #{tpu_custom_call.1} parent=1 // pred_region
      %39 = dma.done [#allocation6], 512
    $region17: #{tpu_custom_call.1} parent=1 // pred_fallthru
      _
    %v40 = vld [vmem:[#allocation2] sm:$0xff]
    %v41 = vld [vmem:[#allocation5] sm:$0xff]
    %v43 = vcombine.high %v40, %v40
    %v45 = vunpack.c.l.s4 1966171168
    %v46 = vunpack.c.0.s8 %v45
    %v47 = vlaneseq
    %v48 = vshrl.u32 %v47, 7
    %v49 = vsub.s32 %v46, %v48
    %v50 = vrot.slane %v40, %v49
    %v52 = vunpack.c.l.s4 1966171168
    %v53 = vunpack.c.0.s8 %v52
    %v54 = vlaneseq
    %v55 = vshrl.u32 %v54, 7
    %v56 = vsub.s32 %v53, %v55
    %v57 = vrot.slane %v43, %v56
    %v58 = vcombine.high %v50, %v50
    %v59 = vcombine.high %v57, %v57
    %v61 = vunpack.c.l.s4 1966171168
    %v62 = vunpack.c.0.s8 %v61
    %v63 = vlaneseq
    %v64 = vshrl.u32 %v63, 7
    %v65 = vsub.s32 %v62, %v64
    %v66 = vrot.slane %v50, %v65
    %v68 = vunpack.c.l.s4 1966171168
    %v69 = vunpack.c.0.s8 %v68
    %v70 = vlaneseq
    %v71 = vshrl.u32 %v70, 7
    %v72 = vsub.s32 %v69, %v71
    %v73 = vrot.slane %v57, %v72
    %v75 = vunpack.c.l.s4 1966171168
    %v76 = vunpack.c.0.s8 %v75
    %v77 = vlaneseq
    %v78 = vshrl.u32 %v77, 7
    %v79 = vsub.s32 %v76, %v78
    %v80 = vrot.slane %v58, %v79
    %v82 = vunpack.c.l.s4 1966171168
    %v83 = vunpack.c.0.s8 %v82
    %v84 = vlaneseq
    %v85 = vshrl.u32 %v84, 7
    %v86 = vsub.s32 %v83, %v85
    %v87 = vrot.slane %v59, %v86
    %v88 = vcombine.high %v66, %v66
    %v89 = vcombine.high %v73, %v73
    %v90 = vcombine.high %v80, %v80
    %v91 = vcombine.high %v87, %v87
    %v92 = vlaneseq
    %v93 = vshrl.u32 %v92, 7
    %v94 = vsub.s32 0, %v93
    %v95 = vrot.slane %v66, %v94
    %v96 = vlaneseq
    %v97 = vshrl.u32 %v96, 7
    %v98 = vsub.s32 0, %v97
    %v99 = vrot.slane %v80, %v98
    %v100 = vlaneseq
    %v101 = vshrl.u32 %v100, 7
    %v102 = vsub.s32 0, %v101
    %v103 = vrot.slane %v88, %v102
    %v104 = vlaneseq
    %v105 = vshrl.u32 %v104, 7
    %v106 = vsub.s32 0, %v105
    %v107 = vrot.slane %v90, %v106
    %v108 = vlaneseq
    %v109 = vshrl.u32 %v108, 7
    %v110 = vsub.s32 0, %v109
    %v111 = vrot.slane %v73, %v110
    %v112 = vlaneseq
    %v113 = vshrl.u32 %v112, 7
    %v114 = vsub.s32 0, %v113
    %v115 = vrot.slane %v87, %v114
    %v116 = vlaneseq
    %v117 = vshrl.u32 %v116, 7
    %v118 = vsub.s32 0, %v117
    %v119 = vrot.slane %v89, %v118
    %v120 = vlaneseq
    %v121 = vshrl.u32 %v120, 7
    %v122 = vsub.s32 0, %v121
    %v123 = vrot.slane %v91, %v122
    %v132 = vsub.f32 %v95, %v41
    %v133 = vsub.f32 %v99, %v41
    %v134 = vsub.f32 %v103, %v41
    %v135 = vsub.f32 %v107, %v41
    %v136 = vsub.f32 %v111, %v41
    %v137 = vsub.f32 %v115, %v41
    %v138 = vsub.f32 %v119, %v41
    %v139 = vsub.f32 %v123, %v41
    %v140 = vmul.f32 %v132, %v132
    %v141 = vmul.f32 %v133, %v133
    %v142 = vmul.f32 %v134, %v134
    %v143 = vmul.f32 %v135, %v135
    %v144 = vmul.f32 %v136, %v136
    %v145 = vmul.f32 %v137, %v137
    %v146 = vmul.f32 %v138, %v138
    %v147 = vmul.f32 %v139, %v139
    %s148 = scalar_lea.vmem [#allocation2], 8
    %v149 = vld [vmem:[%s148] sm:$0xff]
    %s150 = scalar_lea.vmem [#allocation5], 8
    %v151 = vld [vmem:[%s150] sm:$0xff]
    %v153 = vcombine.high %v149, %v149
    %v155 = vunpack.c.l.s4 1966171168
    %v156 = vunpack.c.0.s8 %v155
    %v157 = vlaneseq
    %v158 = vshrl.u32 %v157, 7
    %v159 = vsub.s32 %v156, %v158
    %v160 = vrot.slane %v149, %v159
    %v162 = vunpack.c.l.s4 1966171168
    %v163 = vunpack.c.0.s8 %v162
    %v164 = vlaneseq
    %v165 = vshrl.u32 %v164, 7
    %v166 = vsub.s32 %v163, %v165
    %v167 = vrot.slane %v153, %v166
    %v168 = vcombine.high %v160, %v160
    %v169 = vcombine.high %v167, %v167
    %v171 = vunpack.c.l.s4 1966171168
    %v172 = vunpack.c.0.s8 %v171
    %v173 = vlaneseq
    %v174 = vshrl.u32 %v173, 7
    %v175 = vsub.s32 %v172, %v174
    %v176 = vrot.slane %v160, %v175
    %v178 = vunpack.c.l.s4 1966171168
    %v179 = vunpack.c.0.s8 %v178
    %v180 = vlaneseq
    %v181 = vshrl.u32 %v180, 7
    %v182 = vsub.s32 %v179, %v181
    %v183 = vrot.slane %v167, %v182
    %v185 = vunpack.c.l.s4 1966171168
    %v186 = vunpack.c.0.s8 %v185
    %v187 = vlaneseq
    %v188 = vshrl.u32 %v187, 7
    %v189 = vsub.s32 %v186, %v188
    %v190 = vrot.slane %v168, %v189
    %v192 = vunpack.c.l.s4 1966171168
    %v193 = vunpack.c.0.s8 %v192
    %v194 = vlaneseq
    %v195 = vshrl.u32 %v194, 7
    %v196 = vsub.s32 %v193, %v195
    %v197 = vrot.slane %v169, %v196
    %v198 = vcombine.high %v176, %v176
    %v199 = vcombine.high %v183, %v183
    %v200 = vcombine.high %v190, %v190
    %v201 = vcombine.high %v197, %v197
    %v202 = vlaneseq
    %v203 = vshrl.u32 %v202, 7
    %v204 = vsub.s32 0, %v203
    %v205 = vrot.slane %v176, %v204
    %v206 = vlaneseq
    %v207 = vshrl.u32 %v206, 7
    %v208 = vsub.s32 0, %v207
    %v209 = vrot.slane %v190, %v208
    %v210 = vlaneseq
    %v211 = vshrl.u32 %v210, 7
    %v212 = vsub.s32 0, %v211
    %v213 = vrot.slane %v198, %v212
    %v214 = vlaneseq
    %v215 = vshrl.u32 %v214, 7
    %v216 = vsub.s32 0, %v215
    %v217 = vrot.slane %v200, %v216
    %v218 = vlaneseq
    %v219 = vshrl.u32 %v218, 7
    %v220 = vsub.s32 0, %v219
    %v221 = vrot.slane %v183, %v220
    %v222 = vlaneseq
    %v223 = vshrl.u32 %v222, 7
    %v224 = vsub.s32 0, %v223
    %v225 = vrot.slane %v197, %v224
    %v226 = vlaneseq
    %v227 = vshrl.u32 %v226, 7
    %v228 = vsub.s32 0, %v227
    %v229 = vrot.slane %v199, %v228
    %v230 = vlaneseq
    %v231 = vshrl.u32 %v230, 7
    %v232 = vsub.s32 0, %v231
    %v233 = vrot.slane %v201, %v232
    %v242 = vsub.f32 %v205, %v151
    %v243 = vsub.f32 %v209, %v151
    %v244 = vsub.f32 %v213, %v151
    %v245 = vsub.f32 %v217, %v151
    %v246 = vsub.f32 %v221, %v151
    %v247 = vsub.f32 %v225, %v151
    %v248 = vsub.f32 %v229, %v151
    %v249 = vsub.f32 %v233, %v151
    %v250 = vmul.f32 %v242, %v242
    %v251 = vmul.f32 %v243, %v243
    %v252 = vmul.f32 %v244, %v244
    %v253 = vmul.f32 %v245, %v245
    %v254 = vmul.f32 %v246, %v246
    %v255 = vmul.f32 %v247, %v247
    %v256 = vmul.f32 %v248, %v248
    %v257 = vmul.f32 %v249, %v249
    %v258 = vadd.f32 %v140, %v250
    %v259 = vadd.f32 %v141, %v251
    %v260 = vadd.f32 %v142, %v252
    %v261 = vadd.f32 %v143, %v253
    %v262 = vadd.f32 %v144, %v254
    %v263 = vadd.f32 %v145, %v255
    %v264 = vadd.f32 %v146, %v256
    %v265 = vadd.f32 %v147, %v257
    %s266 = scalar_lea.vmem [#allocation2], 16
    %v267 = vld [vmem:[%s266] sm:$0xff]
    %s268 = scalar_lea.vmem [#allocation5], 16
    %v269 = vld [vmem:[%s268] sm:$0xff]
    %v271 = vcombine.high %v267, %v267
    %v273 = vunpack.c.l.s4 1966171168
    %v274 = vunpack.c.0.s8 %v273
    %v275 = vlaneseq
    %v276 = vshrl.u32 %v275, 7
    %v277 = vsub.s32 %v274, %v276
    %v278 = vrot.slane %v267, %v277
    %v280 = vunpack.c.l.s4 1966171168
    %v281 = vunpack.c.0.s8 %v280
    %v282 = vlaneseq
    %v283 = vshrl.u32 %v282, 7
    %v284 = vsub.s32 %v281, %v283
    %v285 = vrot.slane %v271, %v284
    %v286 = vcombine.high %v278, %v278
    %v287 = vcombine.high %v285, %v285
    %v289 = vunpack.c.l.s4 1966171168
    %v290 = vunpack.c.0.s8 %v289
    %v291 = vlaneseq
    %v292 = vshrl.u32 %v291, 7
    %v293 = vsub.s32 %v290, %v292
    %v294 = vrot.slane %v278, %v293
    %v296 = vunpack.c.l.s4 1966171168
    %v297 = vunpack.c.0.s8 %v296
    %v298 = vlaneseq
    %v299 = vshrl.u32 %v298, 7
    %v300 = vsub.s32 %v297, %v299
    %v301 = vrot.slane %v285, %v300
    %v303 = vunpack.c.l.s4 1966171168
    %v304 = vunpack.c.0.s8 %v303
    %v305 = vlaneseq
    %v306 = vshrl.u32 %v305, 7
    %v307 = vsub.s32 %v304, %v306
    %v308 = vrot.slane %v286, %v307
    %v310 = vunpack.c.l.s4 1966171168
    %v311 = vunpack.c.0.s8 %v310
    %v312 = vlaneseq
    %v313 = vshrl.u32 %v312, 7
    %v314 = vsub.s32 %v311, %v313
    %v315 = vrot.slane %v287, %v314
    %v316 = vcombine.high %v294, %v294
    %v317 = vcombine.high %v301, %v301
    %v318 = vcombine.high %v308, %v308
    %v319 = vcombine.high %v315, %v315
    %v320 = vlaneseq
    %v321 = vshrl.u32 %v320, 7
    %v322 = vsub.s32 0, %v321
    %v323 = vrot.slane %v294, %v322
    %v324 = vlaneseq
    %v325 = vshrl.u32 %v324, 7
    %v326 = vsub.s32 0, %v325
    %v327 = vrot.slane %v308, %v326
    %v328 = vlaneseq
    %v329 = vshrl.u32 %v328, 7
    %v330 = vsub.s32 0, %v329
    %v331 = vrot.slane %v316, %v330
    %v332 = vlaneseq
    %v333 = vshrl.u32 %v332, 7
    %v334 = vsub.s32 0, %v333
    %v335 = vrot.slane %v318, %v334
    %v336 = vlaneseq
    %v337 = vshrl.u32 %v336, 7
    %v338 = vsub.s32 0, %v337
    %v339 = vrot.slane %v301, %v338
    %v340 = vlaneseq
    %v341 = vshrl.u32 %v340, 7
    %v342 = vsub.s32 0, %v341
    %v343 = vrot.slane %v315, %v342
    %v344 = vlaneseq
    %v345 = vshrl.u32 %v344, 7
    %v346 = vsub.s32 0, %v345
    %v347 = vrot.slane %v317, %v346
    %v348 = vlaneseq
    %v349 = vshrl.u32 %v348, 7
    %v350 = vsub.s32 0, %v349
    %v351 = vrot.slane %v319, %v350
    %v360 = vsub.f32 %v323, %v269
    %v361 = vsub.f32 %v327, %v269
    %v362 = vsub.f32 %v331, %v269
    %v363 = vsub.f32 %v335, %v269
    %v364 = vsub.f32 %v339, %v269
    %v365 = vsub.f32 %v343, %v269
    %v366 = vsub.f32 %v347, %v269
    %v367 = vsub.f32 %v351, %v269
    %v368 = vmul.f32 %v360, %v360
    %v369 = vmul.f32 %v361, %v361
    %v370 = vmul.f32 %v362, %v362
    %v371 = vmul.f32 %v363, %v363
    %v372 = vmul.f32 %v364, %v364
    %v373 = vmul.f32 %v365, %v365
    %v374 = vmul.f32 %v366, %v366
    %v375 = vmul.f32 %v367, %v367
    %v376 = vadd.f32 %v258, %v368
    %v377 = vadd.f32 %v259, %v369
    %v378 = vadd.f32 %v260, %v370
    %v379 = vadd.f32 %v261, %v371
    %v380 = vadd.f32 %v262, %v372
    %v381 = vadd.f32 %v263, %v373
    %v382 = vadd.f32 %v264, %v374
    %v383 = vadd.f32 %v265, %v375
    %s384 = scalar_lea.vmem [#allocation2], 24
    %v385 = vld [vmem:[%s384] sm:$0xff]
    %s386 = scalar_lea.vmem [#allocation5], 24
    %v387 = vld [vmem:[%s386] sm:$0xff]
    %v389 = vcombine.high %v385, %v385
    %v391 = vunpack.c.l.s4 1966171168
    %v392 = vunpack.c.0.s8 %v391
    %v393 = vlaneseq
    %v394 = vshrl.u32 %v393, 7
    %v395 = vsub.s32 %v392, %v394
    %v396 = vrot.slane %v385, %v395
    %v398 = vunpack.c.l.s4 1966171168
    %v399 = vunpack.c.0.s8 %v398
    %v400 = vlaneseq
    %v401 = vshrl.u32 %v400, 7
    %v402 = vsub.s32 %v399, %v401
    %v403 = vrot.slane %v389, %v402
    %v404 = vcombine.high %v396, %v396
    %v405 = vcombine.high %v403, %v403
    %v407 = vunpack.c.l.s4 1966171168
    %v408 = vunpack.c.0.s8 %v407
    %v409 = vlaneseq
    %v410 = vshrl.u32 %v409, 7
    %v411 = vsub.s32 %v408, %v410
    %v412 = vrot.slane %v396, %v411
    %v414 = vunpack.c.l.s4 1966171168
    %v415 = vunpack.c.0.s8 %v414
    %v416 = vlaneseq
    %v417 = vshrl.u32 %v416, 7
    %v418 = vsub.s32 %v415, %v417
    %v419 = vrot.slane %v403, %v418
    %v421 = vunpack.c.l.s4 1966171168
    %v422 = vunpack.c.0.s8 %v421
    %v423 = vlaneseq
    %v424 = vshrl.u32 %v423, 7
    %v425 = vsub.s32 %v422, %v424
    %v426 = vrot.slane %v404, %v425
    %v428 = vunpack.c.l.s4 1966171168
    %v429 = vunpack.c.0.s8 %v428
    %v430 = vlaneseq
    %v431 = vshrl.u32 %v430, 7
    %v432 = vsub.s32 %v429, %v431
    %v433 = vrot.slane %v405, %v432
    %v434 = vcombine.high %v412, %v412
    %v435 = vcombine.high %v419, %v419
    %v436 = vcombine.high %v426, %v426
    %v437 = vcombine.high %v433, %v433
    %v438 = vlaneseq
    %v439 = vshrl.u32 %v438, 7
    %v440 = vsub.s32 0, %v439
    %v441 = vrot.slane %v412, %v440
    %v442 = vlaneseq
    %v443 = vshrl.u32 %v442, 7
    %v444 = vsub.s32 0, %v443
    %v445 = vrot.slane %v426, %v444
    %v446 = vlaneseq
    %v447 = vshrl.u32 %v446, 7
    %v448 = vsub.s32 0, %v447
    %v449 = vrot.slane %v434, %v448
    %v450 = vlaneseq
    %v451 = vshrl.u32 %v450, 7
    %v452 = vsub.s32 0, %v451
    %v453 = vrot.slane %v436, %v452
    %v454 = vlaneseq
    %v455 = vshrl.u32 %v454, 7
    %v456 = vsub.s32 0, %v455
    %v457 = vrot.slane %v419, %v456
    %v458 = vlaneseq
    %v459 = vshrl.u32 %v458, 7
    %v460 = vsub.s32 0, %v459
    %v461 = vrot.slane %v433, %v460
    %v462 = vlaneseq
    %v463 = vshrl.u32 %v462, 7
    %v464 = vsub.s32 0, %v463
    %v465 = vrot.slane %v435, %v464
    %v466 = vlaneseq
    %v467 = vshrl.u32 %v466, 7
    %v468 = vsub.s32 0, %v467
    %v469 = vrot.slane %v437, %v468
    %v478 = vsub.f32 %v441, %v387
    %v479 = vsub.f32 %v445, %v387
    %v480 = vsub.f32 %v449, %v387
    %v481 = vsub.f32 %v453, %v387
    %v482 = vsub.f32 %v457, %v387
    %v483 = vsub.f32 %v461, %v387
    %v484 = vsub.f32 %v465, %v387
    %v485 = vsub.f32 %v469, %v387
    %v486 = vmul.f32 %v478, %v478
    %v487 = vmul.f32 %v479, %v479
    %v488 = vmul.f32 %v480, %v480
    %v489 = vmul.f32 %v481, %v481
    %v490 = vmul.f32 %v482, %v482
    %v491 = vmul.f32 %v483, %v483
    %v492 = vmul.f32 %v484, %v484
    %v493 = vmul.f32 %v485, %v485
    %v494 = vadd.f32 %v376, %v486
    %v495 = vadd.f32 %v377, %v487
    %v496 = vadd.f32 %v378, %v488
    %v497 = vadd.f32 %v379, %v489
    %v498 = vadd.f32 %v380, %v490
    %v499 = vadd.f32 %v381, %v491
    %v500 = vadd.f32 %v382, %v492
    %v501 = vadd.f32 %v383, %v493
    %502 = vst [vmem:[#allocation7] sm:$0xff] %v494
    %503 = vst [vmem:[#allocation7 + $0x8] sm:$0xff] %v495
    %504 = vst [vmem:[#allocation7 + $0x10] sm:$0xff] %v496
    %505 = vst [vmem:[#allocation7 + $0x18] sm:$0xff] %v497
    %506 = vst [vmem:[#allocation7 + $0x20] sm:$0xff] %v498
    %507 = vst [vmem:[#allocation7 + $0x28] sm:$0xff] %v499
    %508 = vst [vmem:[#allocation7 + $0x30] sm:$0xff] %v500
    %509 = vst [vmem:[#allocation7 + $0x38] sm:$0xff] %v501
    // Predicated region
    $region18: #{tpu_custom_call.1} parent=1 // pred_check
      _
    $region19: #{tpu_custom_call.1} parent=1 // pred_check_branch
      %511 = sbr.rel (0) target = $region21
    $region20: #{tpu_custom_call.1} parent=1 // pred_region
      %s513 = ssub.s32 1024, 1024
      %514 = vsyncadd [#allocation4], %s513
      %s515 = sshll.u32 [#allocation7], 4
      %s516 = int_to_ptr.vmem [resolvable:$true] %s515
      %521 = dma.vmem_to_hbm [thread:$0]  %s516, 1024, %s2, [#allocation4], 128, 128, 8
    $region21: #{tpu_custom_call.1} parent=1 // pred_fallthru
      _
    // Predicated region
    $region22: #{tpu_custom_call.1} parent=1 // pred_check
      _
    $region23: #{tpu_custom_call.1} parent=1 // pred_check_branch
      %523 = sbr.rel (0) target = $region25
    $region24: #{tpu_custom_call.1} parent=1 // pred_region
      %524 = dma.done [#allocation4], 1024
    $region25: #{tpu_custom_call.1} parent=1 // pred_fallthru
      _
    %525 = vsyncpa [#allocation3], 1
    %526 = vsyncpa [#allocation6], 1
    %527 = vsyncpa [#allocation4], 1

</llo_original>
